<compile_context>
chip_gen: v6e
topology: v6e:2x2x1
jax: 0.10.0
libtpu: 0.0.40
codegen_flags: <defaults>
</compile_context>

<pallas_src>
import functools

import jax
import jax.numpy as jnp
from jax.experimental import pallas as pl
from jax.experimental.pallas import tpu as pltpu


def _cdiv(a, b):
    return (a + b - 1) // b


def _round_up(x, m):
    return _cdiv(x, m) * m


# --------------------------------------------------------------------------
# Kernel body
# --------------------------------------------------------------------------
def _dim1_ln_kernel(x_ref, gb_ref, o_ref, *, eps):
    # x_ref block: (B_TILE, D, T_TILE); axis 1 is the full D extent.
    x = x_ref[...].astype(jnp.float32)                    # f32 statistics
    mean = jnp.mean(x, axis=1, keepdims=True)              # (B_TILE, 1, T_TILE)
    xc = x - mean                                           # centered; reused
    var = jnp.mean(xc * xc, axis=1, keepdims=True)
    xn = xc * jax.lax.rsqrt(var + eps)
    # Packed params: column 0 = gamma, column 1 = beta, each (D, 1) f32.
    gamma = gb_ref[:, 0:1]
    beta = gb_ref[:, 1:2]
    # (D, 1) broadcasts over both the batch and the lane (T) dims.
    o_ref[...] = (xn * gamma + beta).astype(o_ref.dtype)
    # TODO(synk): on v6e/v7x a bf16 normalize/affine chain (reductions kept in
    # f32) would cut VALU slot pressure further at a small accuracy cost.


# --------------------------------------------------------------------------
# Tiling / budget heuristics
# --------------------------------------------------------------------------
def _vmem_limit_bytes():
    """Generation-gated scoped-VMEM budget (v5e/v6e: 128 MiB phys, v7x: 64)."""
    try:
        phys = int(pltpu.get_tpu_info().vmem_capacity_bytes)
    except Exception:
        phys = 64 * 1024 * 1024            # conservative (v7x-safe) fallback
    if phys > 64 * 1024 * 1024:
        return 64 * 1024 * 1024            # v5e / v6e
    return 40 * 1024 * 1024                # v7x (or unknown)


def _block_elems_budget(itemsize, vmem_limit):
    """Max elements per block given the true working set:
    2x double-buffered input + 2x double-buffered output (4*itemsize/elem)
    plus the f32 intermediates (x upcast + xc, ~8 B/elem)."""
    per_elem_bytes = 4 * itemsize + 8
    return max(8 * 128, int(vmem_limit * 0.6) // per_elem_bytes)


def _choose_tiles(B, D, T, itemsize, elems_budget):
    t_full = _round_up(T, 128)
    # Contiguous DMA row floor: >= ~1 KiB per strided row copy.
    t_min = min(t_full, _round_up(max(128, 1024 // itemsize), 128))
    # Largest lane tile the budget allows for a single batch row.
    t_cap = max(128, ((elems_budget // max(1, D)) // 128) * 128)
    t_tile = min(t_full, 4096, max(t_min, t_cap))

    # Pack batches into the block when D * t_tile is far below the budget
    # (small-D regime) so each grid step still moves MiB-scale data.
    b_tile = max(1, min(B, elems_budget // max(1, D * t_tile)))

    # Keep at least 2 parallel grid steps so v7x's two TensorCores both work.
    if _cdiv(B, b_tile) * _cdiv(T, t_tile) < 2:
        if B >= 2:
            b_tile = _cdiv(B, 2)
        elif T > 128:
            t_tile = max(128, _round_up(_cdiv(T, 2), 128))
    return b_tile, t_tile


# --------------------------------------------------------------------------
# Public wrapper (matches Dim1LayerNorm.forward semantics)
# --------------------------------------------------------------------------
def dim1_layer_norm(x, gamma=None, beta=None, eps=1e-5):
    """LayerNorm over dim 1 of x with shape (B, D, T)."""
    B, D, T = x.shape
    if gamma is None:
        gamma = jnp.ones((D,), dtype=jnp.float32)
    if beta is None:
        beta = jnp.zeros((D,), dtype=jnp.float32)
    # Pack gamma/beta into a single (D, 2) f32 parameter array (one resident
    # VMEM stream, halves the lane-padded parameter footprint).
    gb = jnp.concatenate(
        [gamma.astype(jnp.float32).reshape(D, 1),
         beta.astype(jnp.float32).reshape(D, 1)], axis=1)

    itemsize = x.dtype.itemsize
    vmem_limit = _vmem_limit_bytes()
    elems_budget = _block_elems_budget(itemsize, vmem_limit)
    b_tile, t_tile = _choose_tiles(B, D, T, itemsize, elems_budget)

    grid = (_cdiv(B, b_tile), _cdiv(T, t_tile))  # T is the inner (fast) axis

    cost = pl.CostEstimate(
        flops=8 * B * D * T,
        transcendentals=B * T,                       # rsqrt per (b, t) column
        bytes_accessed=2 * B * D * T * itemsize + D * 2 * 4,
    )

    kernel = functools.partial(_dim1_ln_kernel, eps=eps)
    return pl.pallas_call(
        kernel,
        out_shape=jax.ShapeDtypeStruct((B, D, T), x.dtype),
        grid_spec=pltpu.PrefetchScalarGridSpec(
            num_scalar_prefetch=0,
            grid=grid,
            in_specs=[
                pl.BlockSpec((b_tile, D, t_tile), lambda b, t: (b, 0, t)),
                # Packed params: constant block index -> stays VMEM-resident.
                pl.BlockSpec((D, 2), lambda b, t: (0, 0)),
            ],
            out_specs=pl.BlockSpec((b_tile, D, t_tile), lambda b, t: (b, 0, t)),
        ),
        compiler_params=pltpu.CompilerParams(
            # Every block is independent -> both axes megacore-shardable.
            dimension_semantics=("parallel", "parallel"),
            vmem_limit_bytes=vmem_limit,
        ),
        cost_estimate=cost,
    )(x, gb)


def dim1_layer_norm_ref(x, gamma, beta, eps=1e-5):
    """Pure-JAX reference mirroring the PyTorch functional version."""
    xf = x.astype(jnp.float32)
    mean = jnp.mean(xf, axis=1, keepdims=True)
    var = jnp.mean((xf - mean) ** 2, axis=1, keepdims=True)
    xn = (xf - mean) * jax.lax.rsqrt(var + eps)
    y = xn * gamma.astype(jnp.float32).reshape(1, -1, 1) \
        + beta.astype(jnp.float32).reshape(1, -1, 1)
    return y.astype(x.dtype)


if __name__ == "__main__":
    eps = 1e-5
    key = jax.random.PRNGKey(0)
    k1, k2, k3 = jax.random.split(key, 3)

    # Case 1: small shape from the module spec (B, D, T) = (2, 4, 16).
    B, D, T = 2, 4, 16
    x = jax.random.normal(k1, (B, D, T), dtype=jnp.float32)
    gamma = jnp.ones((D,), jnp.float32) + 0.1 * jnp.arange(D, dtype=jnp.float32)
    beta = 0.01 * jnp.arange(D, dtype=jnp.float32)
    out = jax.block_until_ready(dim1_layer_norm(x, gamma, beta, eps=eps))
    ref = dim1_layer_norm_ref(x, gamma, beta, eps=eps)
    assert out.shape == (B, D, T)
    assert jnp.allclose(out, ref, atol=1e-5, rtol=1e-5)

    # Case 2: lane-aligned T, multiple parallel grid steps.
    B2, D2, T2 = 2, 8, 384
    x2 = jax.random.normal(k2, (B2, D2, T2), dtype=jnp.float32)
    gamma2 = jnp.ones((D2,), jnp.float32) + 0.05 * jnp.arange(D2, dtype=jnp.float32)
    beta2 = 0.02 * jnp.arange(D2, dtype=jnp.float32)
    out2 = jax.block_until_ready(dim1_layer_norm(x2, gamma2, beta2, eps=eps))
    ref2 = dim1_layer_norm_ref(x2, gamma2, beta2, eps=eps)
    assert out2.shape == (B2, D2, T2)
    assert jnp.allclose(out2, ref2, atol=1e-5, rtol=1e-5)

    # Case 3: bf16 input, unaligned T and odd B -> exercises ragged T and
    # batch-packed (B_TILE > 1) blocks with padding discarded on writeback.
    B3, D3, T3 = 3, 256, 200
    x3 = jax.random.normal(k3, (B3, D3, T3), dtype=jnp.float32).astype(jnp.bfloat16)
    gamma3 = (jnp.ones((D3,), jnp.float32)
              + 0.01 * jnp.arange(D3, dtype=jnp.float32))
    beta3 = 0.005 * jnp.arange(D3, dtype=jnp.float32)
    out3 = jax.block_until_ready(dim1_layer_norm(x3, gamma3, beta3, eps=eps))
    ref3 = dim1_layer_norm_ref(x3, gamma3, beta3, eps=eps)
    assert out3.shape == (B3, D3, T3)
    assert jnp.allclose(out3.astype(jnp.float32), ref3.astype(jnp.float32),
                        atol=3e-2, rtol=3e-2)

    print("KERNEL_OK")
</pallas_src>

<mosaic_0001>
module attributes {stable_mosaic.version = 11 : i64} {
  func.func @_dim1_ln_kernel(%arg0: i32, %arg1: i32, %arg2: memref<1x4x128xf32, #tpu.memory_space<vmem>>, %arg3: memref<4x2xf32, #tpu.memory_space<vmem>>, %arg4: memref<1x4x128xf32, #tpu.memory_space<vmem>>) attributes {dimension_semantics = [#tpu.dimension_semantics<parallel>, #tpu.dimension_semantics<parallel>], iteration_bounds = array<i64: 2, 1>, scalar_prefetch = 0 : i64, scratch_operands = 0 : i64, tpu.core_type = #tpu.core_type<tc>, window_params = [{transform_indices = @transform_0, window_bounds = array<i64: 1, 4, 128>}, {pipeline_mode = #tpu.pipeline_mode<synchronous>, transform_indices = @transform_1, window_bounds = array<i64: 4, 2>}, {transform_indices = @transform_2, window_bounds = array<i64: 1, 4, 128>}]} {
    %c0 = arith.constant 0 : index
    %c0_0 = arith.constant 0 : index
    %c0_1 = arith.constant 0 : index
    %0 = vector.load %arg2[%c0, %c0_0, %c0_1] : memref<1x4x128xf32, #tpu.memory_space<vmem>>, vector<1x4x128xf32>
    %cst = arith.constant dense<0.000000e+00> : vector<1x128xf32>
    %1 = vector.multi_reduction <add>, %0, %cst [1] : vector<1x4x128xf32> to vector<1x128xf32>
    %2 = vector.shape_cast %1 : vector<1x128xf32> to vector<1x1x128xf32>
    %cst_2 = arith.constant 4.000000e+00 : f32
    %3 = vector.broadcast %cst_2 : f32 to vector<1x1x128xf32>
    %4 = arith.divf %2, %3 : vector<1x1x128xf32>
    %5 = vector.broadcast %4 : vector<1x1x128xf32> to vector<1x4x128xf32>
    %6 = arith.subf %0, %5 : vector<1x4x128xf32>
    %7 = arith.mulf %6, %6 : vector<1x4x128xf32>
    %cst_3 = arith.constant dense<0.000000e+00> : vector<1x128xf32>
    %8 = vector.multi_reduction <add>, %7, %cst_3 [1] : vector<1x4x128xf32> to vector<1x128xf32>
    %9 = vector.shape_cast %8 : vector<1x128xf32> to vector<1x1x128xf32>
    %cst_4 = arith.constant 4.000000e+00 : f32
    %10 = vector.broadcast %cst_4 : f32 to vector<1x1x128xf32>
    %11 = arith.divf %9, %10 : vector<1x1x128xf32>
    %cst_5 = arith.constant 9.99999974E-6 : f32
    %12 = vector.broadcast %cst_5 : f32 to vector<1x1x128xf32>
    %13 = arith.addf %11, %12 : vector<1x1x128xf32>
    %14 = math.rsqrt %13 : vector<1x1x128xf32>
    %15 = vector.broadcast %14 : vector<1x1x128xf32> to vector<1x4x128xf32>
    %16 = arith.mulf %6, %15 : vector<1x4x128xf32>
    %c0_6 = arith.constant 0 : index
    %c0_7 = arith.constant 0 : index
    %17 = vector.load %arg3[%c0_6, %c0_7] : memref<4x2xf32, #tpu.memory_space<vmem>>, vector<4x1xf32>
    %c0_8 = arith.constant 0 : index
    %c1 = arith.constant 1 : index
    %18 = vector.load %arg3[%c0_8, %c1] : memref<4x2xf32, #tpu.memory_space<vmem>>, vector<4x1xf32>
    %19 = vector.shape_cast %17 : vector<4x1xf32> to vector<1x4x1xf32>
    %20 = vector.broadcast %19 : vector<1x4x1xf32> to vector<1x4x128xf32>
    %21 = arith.mulf %16, %20 : vector<1x4x128xf32>
    %22 = vector.shape_cast %18 : vector<4x1xf32> to vector<1x4x1xf32>
    %23 = vector.broadcast %22 : vector<1x4x1xf32> to vector<1x4x128xf32>
    %24 = arith.addf %21, %23 : vector<1x4x128xf32>
    %c0_9 = arith.constant 0 : index
    %c0_10 = arith.constant 0 : index
    %c0_11 = arith.constant 0 : index
    %25 = vector.load %arg4[%c0_9, %c0_10, %c0_11] : memref<1x4x128xf32, #tpu.memory_space<vmem>>, vector<1x4x128xf32>
    tpu.vector_store %arg4[%c0_9, %c0_10, %c0_11], %24 {strides = array<i32>} : memref<1x4x128xf32, #tpu.memory_space<vmem>>, vector<1x4x128xf32>,
    return
  }
  func.func @transform_0(%arg0: i32, %arg1: i32) -> (i32, i32, i32) {
    %c0_i32 = arith.constant 0 : i32
    %c0_i32_0 = arith.constant 0 : i32
    return %arg0, %c0_i32, %arg1 : i32, i32, i32
  }
  func.func @transform_1(%arg0: i32, %arg1: i32) -> (i32, i32) {
    %c0_i32 = arith.constant 0 : i32
    %c0_i32_0 = arith.constant 0 : i32
    %c0_i32_1 = arith.constant 0 : i32
    return %c0_i32, %c0_i32_0 : i32, i32
  }
  func.func @transform_2(%arg0: i32, %arg1: i32) -> (i32, i32, i32) {
    %c0_i32 = arith.constant 0 : i32
    %c0_i32_0 = arith.constant 0 : i32
    return %arg0, %c0_i32, %arg1 : i32, i32, i32
  }
}

</mosaic_0001>

<llo_original>
// kernel: tpu_custom_call.1
$region0: #{tpu_custom_call.1}
  #allocation0 [shape = 'u32[]', space=smem, size = 0x4, offset = 0x4, fixed_abs, tag = 'smem constant byte address 0x4 - core index']
  #allocation1 [shape = 'u32[144,128]{1,0:T(1,128)}', space=vmem, size = 0x12000, scoped, tag = 'internal scratch']
  %s0 = inlined_call_operand.hbm [shape: f32[2,4,16], index: 0, kind: input, shape index: {}]
  %s1 = inlined_call_operand.vmem [shape: f32[4,2], index: 1, kind: input, shape index: {}]
  %s2 = inlined_call_operand.hbm [shape: f32[2,4,16], index: 2, kind: output, shape index: {}]
  %s3 = sld [smem:[#allocation0]]
  $region45: #{tpu_custom_call.1} parent=0
    _
  %s5 = ssub.s32 1, %s3
  %s6 = scalar_select 0, %s5, %s3
  $region1: #{tpu_custom_call.1} parent=0
    #allocation2 [shape = 'u8[4096]{0}', space=vmem, size = 0x1000, scoped, tag = 'input window, operand 0']
    #allocation3 [shape = 's32[2]{0}', space=sflag, size = 0x8, scoped, tag = 'scoped memory for tpu_custom_call.1']
    #allocation4 [shape = 's32[2]{0}', space=sflag, size = 0x8, scoped, tag = 'scoped memory for tpu_custom_call.1']
    #allocation5 [shape = 'u8[4096]{0}', space=vmem, size = 0x1000, scoped, tag = 'output window, operand 0']
    %7 = vsyncpa [#allocation3], 0
    %s8 = scalar_lea.sflag [#allocation3], 1
    %9 = vsyncpa %s8, 0
    %10 = vsyncpa [#allocation4], 0
    %s11 = scalar_lea.sflag [#allocation4], 1
    %12 = vsyncpa %s11, 0
    loop: start=0, step=1, limit=4
    $region2: #{tpu_custom_call.1} parent=1 // loop_pre_header
      _
    $region3: #{tpu_custom_call.1} parent=1 // loop_header
      %s14 = sphi 0, %s18
      %p15 = scmp.ge.s32.totalorder %s14, 4
      %s21 = sphi 0, %s33
      %s22 = sphi 0, %s29
      %s23 = sphi 0, %s21
      %s24 = sphi 0, %s22
      %s25 = sphi 0, %s23
      %s26 = sphi 0, %s24
      %s38 = sphi 0, %s40
      %s41 = sphi 0, %s38
      %s42 = sphi 0, %s41
      %s58 = sphi 0, %s42
      %s62 = sphi 0, %s62
      %s64 = sphi 0, %s62
      %s65 = sphi 0, %s64
      %s79 = sphi 0, %s65
      %s87 = sphi 0, %s89
      %s90 = sphi 0, %s87
      %s91 = sphi 0, %s90
      %s107 = sphi 0, %s91
    $region4: #{tpu_custom_call.1} parent=1 // loop_header_branch
      %17 = sbr.rel (%p15) target = $region8
    $region5: #{tpu_custom_call.1} parent=1 // loop_body
      %s19 = ssub.s32 %s14, 1
      %s20 = ssub.s32 %s14, 2
      %s27 = sadd.s32 1, %s22
      %p28 = scmp.ge.s32.totalorder %s27, 1
      %s29 = scalar_select %p28, 0, %s27
      %s30 = sadd.s32 1, %s21
      %s31 = scalar_select %p28, %s30, %s21
      %p32 = scmp.ge.s32.totalorder %s31, 2
      %s33 = scalar_select %p32, 0, %s31
      %s34 = ssub.s32 %s21, %s33
      %s35 = ssub.s32 %s22, %s29
      %s36 = sor.u32 %s34, %s35
      %p37 = scmp.eq.s32.totalorder %s36, 0
      %s39 = sadd.s32 %s38, 1
      %s40 = scalar_select %p37, %s38, %s39
      %p43 = pneg %p37
      %p44 = scmp.eq.s32.totalorder %s14, 1
      %p45 = por %p43, %p44
      %p46 = scmp.ne.s32.totalorder %s38, %s41
      %p47 = scmp.eq.s32.totalorder %s14, 0
      %p48 = por %p46, %p47
      %p49 = scmp.ne.s32.totalorder %s38, %s41
      %p50 = scmp.eq.s32.totalorder %s19, 1
      %p51 = por %p49, %p50
      %p52 = scmp.ne.s32.totalorder %s41, %s42
      %p53 = scmp.eq.s32.totalorder %s19, 0
      %p54 = por %p52, %p53
      %p55 = scmp.ne.s32.totalorder %s41, %s42
      %p56 = scmp.eq.s32.totalorder %s20, 1
      %p57 = por %p55, %p56
      %p59 = scmp.ne.s32.totalorder %s42, %s58
      %p60 = scmp.eq.s32.totalorder %s20, 0
      %p61 = por %p59, %p60
      %s63 = sadd.s32 %s62, 1
      %p66 = scmp.eq.s32.totalorder %s14, 1
      %p67 = scmp.ne.s32.totalorder %s62, %s64
      %p68 = scmp.eq.s32.totalorder %s14, 0
      %p69 = por %p67, %p68
      %p70 = scmp.ne.s32.totalorder %s62, %s64
      %p71 = scmp.eq.s32.totalorder %s19, 1
      %p72 = por %p70, %p71
      %p73 = scmp.ne.s32.totalorder %s64, %s65
      %p74 = scmp.eq.s32.totalorder %s19, 0
      %p75 = por %p73, %p74
      %p76 = scmp.ne.s32.totalorder %s64, %s65
      %p77 = scmp.eq.s32.totalorder %s20, 1
      %p78 = por %p76, %p77
      %p80 = scmp.ne.s32.totalorder %s65, %s79
      %p81 = scmp.eq.s32.totalorder %s20, 0
      %p82 = por %p80, %p81
      %s83 = ssub.s32 %s21, %s33
      %s84 = ssub.s32 %s22, %s29
      %s85 = sor.u32 %s83, %s84
      %p86 = scmp.eq.s32.totalorder %s85, 0
      %s88 = sadd.s32 %s87, 1
      %s89 = scalar_select %p86, %s87, %s88
      %p92 = pneg %p86
      %p93 = scmp.eq.s32.totalorder %s14, 1
      %p94 = por %p92, %p93
      %p95 = scmp.ne.s32.totalorder %s87, %s90
      %p96 = scmp.eq.s32.totalorder %s14, 0
      %p97 = por %p95, %p96
      %p98 = scmp.ne.s32.totalorder %s87, %s90
      %p99 = scmp.eq.s32.totalorder %s19, 1
      %p100 = por %p98, %p99
      %p101 = scmp.ne.s32.totalorder %s90, %s91
      %p102 = scmp.eq.s32.totalorder %s19, 0
      %p103 = por %p101, %p102
      %p104 = scmp.ne.s32.totalorder %s90, %s91
      %p105 = scmp.eq.s32.totalorder %s20, 1
      %p106 = por %p104, %p105
      %p108 = scmp.ne.s32.totalorder %s91, %s107
      %p109 = scmp.eq.s32.totalorder %s20, 0
      %p110 = por %p108, %p109
      %p111 = scmp.le.s32.totalorder 1, %s14
      %p112 = scmp.lt.s32.totalorder %s14, 3
      %p113 = pnand %p111, %p112
      %p114 = pneg %p113
      // Predicated region
      $region9: #{tpu_custom_call.1} parent=5 // pred_check
        _
      $region10: #{tpu_custom_call.1} parent=5 // pred_check_branch
        %116 = sbr.rel (%p113) target = $region12
      $region11: #{tpu_custom_call.1} parent=5 // pred_region
        %s117 = ssub.s32 %s14, 1
        // Predicated region
        $region13: #{tpu_custom_call.1} parent=11 // pred_check
          %p118 = pneg %p75
        $region14: #{tpu_custom_call.1} parent=11 // pred_check_branch
          %120 = sbr.rel (%p118) target = $region16
        $region15: #{tpu_custom_call.1} parent=11 // pred_region
          _
        $region16: #{tpu_custom_call.1} parent=11 // pred_fallthru
          _
      $region12: #{tpu_custom_call.1} parent=5 // pred_fallthru
        _
      %p121 = scmp.lt.s32.totalorder %s14, 2
      // Predicated region
      $region17: #{tpu_custom_call.1} parent=5 // pred_check
        %p122 = pneg %p121
      $region18: #{tpu_custom_call.1} parent=5 // pred_check_branch
        %124 = sbr.rel (%p122) target = $region20
      $region19: #{tpu_custom_call.1} parent=5 // pred_region
        // Predicated region
        $region21: #{tpu_custom_call.1} parent=19 // pred_check
          %p125 = pneg %p48
        $region22: #{tpu_custom_call.1} parent=19 // pred_check_branch
          %127 = sbr.rel (%p125) target = $region24
        $region23: #{tpu_custom_call.1} parent=19 // pred_region
          %s128 = sand.u32 %s38, 1
          %s129 = scalar_lea.sflag [#allocation3], %s128
          %s130 = sand.u32 %s38, 1
          %s131 = smul.addr %s130, 4
          %s132 = scalar_lea.vmem [#allocation2], %s131
          %s134 = ssub.s32 64, 64
          %135 = vsyncadd %s129, %s134
          %s136 = sadd.s32 %s22, %s21
          %s137 = smul.addr %s136, 64
          %s138 = scalar_lea.hbm %s0, %s137
          %s140 = sshll.u32 %s132, 4
          %s141 = int_to_ptr.vmem [resolvable:$true] %s140
          %143 = dma.hbm_to_vmem [thread:$0]  %s138, 64, %s141, %s129
        $region24: #{tpu_custom_call.1} parent=19 // pred_fallthru
          _
      $region20: #{tpu_custom_call.1} parent=5 // pred_fallthru
        _
      %p144 = scmp.le.s32.totalorder 1, %s14
      %p145 = scmp.lt.s32.totalorder %s14, 3
      %p146 = pnand %p144, %p145
      %p147 = pneg %p146
      // Predicated region
      $region25: #{tpu_custom_call.1} parent=5 // pred_check
        _
      $region26: #{tpu_custom_call.1} parent=5 // pred_check_branch
        %149 = sbr.rel (%p146) target = $region28
      $region27: #{tpu_custom_call.1} parent=5 // pred_region
        %s150 = ssub.s32 %s14, 1
        %s151 = sand.u32 %s41, 1
        %s152 = scalar_lea.sflag [#allocation3], %s151
        %s153 = sand.u32 %s41, 1
        %s154 = smul.addr %s153, 4
        %s155 = scalar_lea.vmem [#allocation2], %s154
        // Predicated region
        $region29: #{tpu_custom_call.1} parent=27 // pred_check
          %p156 = pneg %p54
        $region30: #{tpu_custom_call.1} parent=27 // pred_check_branch
          %158 = sbr.rel (%p156) target = $region32
        $region31: #{tpu_custom_call.1} parent=27 // pred_region
          %159 = dma.done %s152, 64
        $region32: #{tpu_custom_call.1} parent=27 // pred_fallthru
          _
        %s160 = sand.u32 %s41, 1
        %s161 = scalar_lea.sflag [#allocation3], %s160
        %s162 = sand.u32 %s41, 1
        %s163 = smul.addr %s162, 4
        %s164 = scalar_lea.vmem [#allocation2], %s163
        %p165 = pneg %p54
        %p166 = pneg %p51
        %p167 = pneg %p75
        %p168 = pneg %p72
        %p169 = pneg %p103
        %p170 = pneg %p100
        %s171 = sand.u32 %s90, 1
        %s172 = scalar_lea.sflag [#allocation4], %s171
        %s173 = sand.u32 %s90, 1
        %s174 = smul.addr %s173, 4
        %s175 = scalar_lea.vmem [#allocation5], %s174
        %v176 = vld [vmem:[%s155] sm:$0xf]
        %vm177 = vcmask 1043456
        %v178 = vsel %vm177, %v176, 0.0
        %v179 = vrot.slane %v178, 4
        %v180 = vadd.f32 %v178, %v179
        %v181 = vrot.slane %v180, 2
        %v182 = vadd.f32 %v180, %v181
        %v183 = vrot.slane %v182, 1
        %v184 = vadd.f32 %v182, %v183
        %v185 = vrcp.pop 4.0
        %v186 = vmul.f32 %v184, %v185
        %v187 = vsub.f32 %v176, %v186
        %v188 = vmul.f32 %v187, %v187
        %v189 = vsel %vm177, %v188, 0.0
        %v190 = vrot.slane %v189, 4
        %v191 = vadd.f32 %v189, %v190
        %v192 = vrot.slane %v191, 2
        %v193 = vadd.f32 %v191, %v192
        %v194 = vrot.slane %v193, 1
        %v195 = vadd.f32 %v193, %v194
        %v196 = vmul.f32 %v195, %v185
        %v197 = vadd.f32 %v196, 1e-05
        %v198 = vrsqrt.pop %v197
        %v199 = vmul.f32 %v187, %v198
        %v200 = vld [vmem:[%s1] sm:$0xf]
        %202 = vset.pattern.permute.xlu0 0
        %203 = vperm.xlu0 %202, %v200
        %v204 = vpop.permute.xlu0 %203
        %v206 = vmul.f32 %v199, %v204
        %207 = vset.pattern.permute.xlu0 1
        %208 = vperm.xlu0 %207, %v200
        %v209 = vpop.permute.xlu0 %208
        %v211 = vadd.f32 %v206, %v209
        %212 = vst [vmem:[%s175] sm:$0xf] %v211
        %s213 = sand.u32 %s90, 1
        %s214 = scalar_lea.sflag [#allocation4], %s213
        %s215 = sand.u32 %s90, 1
        %s216 = smul.addr %s215, 4
        %s217 = scalar_lea.vmem [#allocation5], %s216
        // Predicated region
        $region33: #{tpu_custom_call.1} parent=27 // pred_check
          %p218 = pneg %p100
        $region34: #{tpu_custom_call.1} parent=27 // pred_check_branch
          %220 = sbr.rel (%p218) target = $region36
        $region35: #{tpu_custom_call.1} parent=27 // pred_region
          %s222 = ssub.s32 64, 64
          %223 = vsyncadd %s214, %s222
          %s224 = sadd.s32 %s24, %s23
          %s225 = smul.addr %s224, 64
          %s226 = scalar_lea.hbm %s2, %s225
          %s228 = sshll.u32 %s217, 4
          %s229 = int_to_ptr.vmem [resolvable:$true] %s228
          %231 = dma.vmem_to_hbm [thread:$0]  %s229, 64, %s226, %s214
        $region36: #{tpu_custom_call.1} parent=27 // pred_fallthru
          _
      $region28: #{tpu_custom_call.1} parent=5 // pred_fallthru
        _
      %p232 = scmp.le.s32.totalorder 2, %s14
      // Predicated region
      $region37: #{tpu_custom_call.1} parent=5 // pred_check
        %p233 = pneg %p232
      $region38: #{tpu_custom_call.1} parent=5 // pred_check_branch
        %235 = sbr.rel (%p233) target = $region40
      $region39: #{tpu_custom_call.1} parent=5 // pred_region
        %s236 = ssub.s32 %s14, 2
        // Predicated region
        $region41: #{tpu_custom_call.1} parent=39 // pred_check
          %p237 = pneg %p106
        $region42: #{tpu_custom_call.1} parent=39 // pred_check_branch
          %239 = sbr.rel (%p237) target = $region44
        $region43: #{tpu_custom_call.1} parent=39 // pred_region
          %s240 = sand.u32 %s91, 1
          %s241 = scalar_lea.sflag [#allocation4], %s240
          %s242 = sand.u32 %s91, 1
          %s243 = smul.addr %s242, 4
          %s244 = scalar_lea.vmem [#allocation5], %s243
          %245 = dma.done %s241, 64
        $region44: #{tpu_custom_call.1} parent=39 // pred_fallthru
          _
      $region40: #{tpu_custom_call.1} parent=5 // pred_fallthru
        _
    $region6: #{tpu_custom_call.1} parent=1 // loop_footer
      %s18 = sadd.s32 1, %s14
    $region7: #{tpu_custom_call.1} parent=1 // loop_footer_branch
      %13 = sbr.rel target = $region3
    $region8: #{tpu_custom_call.1} parent=1 // loop_exit
      _
    %246 = vsyncpa [#allocation3], 1
    %s247 = scalar_lea.sflag [#allocation3], 1
    %248 = vsyncpa %s247, 1
    %249 = vsyncpa [#allocation4], 1
    %s250 = scalar_lea.sflag [#allocation4], 1
    %251 = vsyncpa %s250, 1

</llo_original>
